<compile_context>
chip_gen: v6e
topology: v6e:2x2x1
jax: 0.10.0
libtpu: 0.0.40
codegen_flags: <defaults>
</compile_context>

<pallas_src>
import jax
import jax.numpy as jnp
from jax import lax
from jax.experimental import pallas as pl
from jax.experimental.pallas import tpu as pltpu

BN_EPS = 1e-5
LANE = 128


def _round_up(a, b):
    return ((a + b - 1) // b) * b


def _num_tensorcores_per_chip():
    """2 on v7x (megacore sharding via 'parallel' grid axes), else 1."""
    try:
        kind = jax.devices()[0].device_kind.lower()
    except Exception:
        return 1
    # v5e/v6e are single-TC; v7x has 2 TCs/chip.  (Forcing a split on the
    # single-TC chips is pure grid-step overhead, so default to 1.)
    return 2 if "v7" in kind else 1


# ---------------------------------------------------------------------------
# Kernel
# ---------------------------------------------------------------------------
def _make_ffn_kernel(num_hidden_layers):
    """Whole FFN stack (BN pre-folded) for one (tile_n, in_dim) batch slab."""

    def kernel(x_ref, *refs):
        out_ref = refs[-1]
        params = refs[:-1]

        h = x_ref[...]                      # (tile_n, in_dim) bf16, natural layout
        first = True

        def first_matmul(w, xb):
            # Contract the feature axis of both operands:
            #   W (out, in)  x  x (tile_n, in)  ->  (out, tile_n)
            # Puts the batch on the lane axis without any wrapper-side
            # transpose of x; bf16 x bf16 with f32 accumulation on the MXU.
            return lax.dot_general(
                w, xb, dimension_numbers=(((1,), (1,)), ((), ())),
                preferred_element_type=jnp.float32)

        for l in range(num_hidden_layers):
            w = params[2 * l][...]                      # (out, in) bf16, BN folded
            b = params[2 * l + 1][...]                  # (out, 1)  f32
            if first:
                z = first_matmul(w, h)
                first = False
            else:
                z = jnp.dot(w.astype(jnp.float32), h,
                            preferred_element_type=jnp.float32)
            h = jnp.maximum(z + b, 0.0)                 # bias + ReLU, lane-dense f32
            # BatchNorm (eval): folded into the next layer's W/b in the wrapper.
            # Dropout(0.5): identity in eval mode.

        w_out = params[2 * num_hidden_layers][...]      # (1, prev) bf16
        b_out = params[2 * num_hidden_layers + 1][...]  # (1, 1)    f32
        if first:
            logits = first_matmul(w_out, h) + b_out
        else:
            logits = jnp.dot(w_out.astype(jnp.float32), h,
                             preferred_element_type=jnp.float32) + b_out
        # Sigmoid: exp on the EUP, divide via approx reciprocal (also EUP).
        out_ref[...] = pl.reciprocal(1.0 + jnp.exp(-logits),
                                     approx=True).astype(out_ref.dtype)

    return kernel


# ---------------------------------------------------------------------------
# Parameter construction (PyTorch layout) + eval-mode BN folding
# ---------------------------------------------------------------------------
def init_ffn_params(key, input_dim, architecture):
    """Deterministic params in PyTorch layout: W (out,in), b/BN vectors (out,)."""
    hidden = []
    prev = input_dim
    for hdim in architecture:
        key, kw, kb, krm, krv = jax.random.split(key, 5)
        bound = 1.0 / (prev ** 0.5)
        w = jax.random.uniform(kw, (hdim, prev), jnp.float32, -bound, bound)
        b = jax.random.uniform(kb, (hdim,), jnp.float32, -bound, bound)
        gamma = jnp.ones((hdim,), jnp.float32)
        beta = jnp.zeros((hdim,), jnp.float32)
        rmean = 0.1 * jax.random.normal(krm, (hdim,), jnp.float32)
        rvar = 1.0 + 0.1 * jax.random.uniform(krv, (hdim,), jnp.float32)
        hidden.append((w, b, gamma, beta, rmean, rvar))
        prev = hdim
    key, kw, kb = jax.random.split(key, 3)
    bound = 1.0 / (prev ** 0.5)
    w_out = jax.random.uniform(kw, (1, prev), jnp.float32, -bound, bound)
    b_out = jax.random.uniform(kb, (1,), jnp.float32, -bound, bound)
    return hidden, (w_out, b_out)


def fold_bn_into_linears(hidden_params, out_params):
    """Fold eval-mode BatchNorm affine into the *next* Linear's W/b.

    h_bn = s*relu(z) + t  with  s = gamma*rsqrt(rvar+eps), t = beta - rmean*s
    W_next @ h_bn + b_next = (W_next*diag(s)) @ relu(z) + (W_next @ t + b_next)

    Weights are emitted in bf16 (HBM/MXU rate), biases stay f32 (added to the
    f32 accumulator).  If hidden widths ever grow, pad the folded weights to
    128/256-multiples here (once at wrapper time), never per grid step.
    """
    folded = []
    pending_s = None
    pending_t = None
    for (w, b, gamma, beta, rmean, rvar) in hidden_params:
        if pending_s is not None:
            b = b + w @ pending_t
            w = w * pending_s[None, :]
        folded.append(w.astype(jnp.bfloat16))
        folded.append(b.reshape(-1, 1).astype(jnp.float32))
        s = gamma * jax.lax.rsqrt(rvar + BN_EPS)
        t = beta - rmean * s
        pending_s, pending_t = s, t
    w_out, b_out = out_params
    if pending_s is not None:
        b_out = b_out + w_out @ pending_t
        w_out = w_out * pending_s[None, :]
    folded.append(w_out.astype(jnp.bfloat16))
    folded.append(b_out.reshape(-1, 1).astype(jnp.float32))
    return folded


# ---------------------------------------------------------------------------
# Wrapper
# ---------------------------------------------------------------------------
def _choose_tile_n(n, input_dim, widest, num_tc, *,
                   max_tile_n=8192, vmem_budget_bytes=12 * 1024 * 1024):
    """Largest lane-aligned batch tile under a VMEM budget.

    Per-batch-column accounting: double-buffered bf16 x block, double-buffered
    f32 output row, ~two live f32 activation slabs of the widest layer.  The
    12 MiB budget stays under the smallest default scoped VMEM limit
    (v5e: 16 MiB) and well under v7x's 64 MiB physical VMEM.
    """
    per_col = 2 * input_dim * 2 + 2 * 4 + 2 * max(widest, 1) * 4
    vmem_cap = max(LANE, (vmem_budget_bytes // per_col) // LANE * LANE)
    tile = min(_round_up(max_tile_n, LANE), vmem_cap)
    if num_tc > 1:
        # v7x megacore: keep >= num_tc equal-sized grid steps so both
        # TensorCores get work via dimension_semantics=("parallel",).
        tile = min(tile, _round_up(pl.cdiv(n, num_tc), LANE))
    tile = min(tile, _round_up(n, LANE))     # don't exceed the (padded) batch
    return max(LANE, tile)


def ffn_classifier_forward(x, folded_params, num_hidden_layers, *, max_tile_n=8192):
    n, input_dim = x.shape
    widest = max([p.shape[0] for p in folded_params[::2]] + [input_dim])

    num_tc = _num_tensorcores_per_chip()
    tile_n = _choose_tile_n(n, input_dim, widest, num_tc, max_tile_n=max_tile_n)
    grid = pl.cdiv(n, tile_n)
    n_pad = grid * tile_n

    # bf16 halves the HBM bytes of the dominant x read (free if the caller
    # already supplies bf16).  Pad only batch rows (contiguous) when the batch
    # doesn't divide the tile; padded rows are finite zeros, sliced off after.
    x = x.astype(jnp.bfloat16)
    if n_pad != n:
        x = jnp.pad(x, ((0, n_pad - n), (0, 0)))

    kernel = _make_ffn_kernel(num_hidden_layers)

    # x: one contiguous (tile_n, input_dim) run of rows per grid step.
    in_specs = [pl.BlockSpec((tile_n, input_dim), lambda i: (i, 0))]
    # Params are small 2-D tensors kept fully resident (block == full array,
    # constant block index => fetched once).
    for p in folded_params:
        in_specs.append(pl.BlockSpec(p.shape, lambda i: (0, 0)))

    # Lane-dense (1, tile_n) output row: batch on lanes, no masked stores.
    out_spec = pl.BlockSpec((1, tile_n), lambda i: (0, i))

    # Raise the scoped-VMEM limit only if the footprint estimate exceeds the
    # smallest default (v5e 16 MiB); the tile derivation normally keeps us under.
    est = (2 * tile_n * input_dim * 2 + 2 * tile_n * 4
           + 2 * widest * tile_n * 4
           + sum(2 * int(p.size) * p.dtype.itemsize for p in folded_params))
    ckw = dict(dimension_semantics=("parallel",))
    if est > 12 * 1024 * 1024:
        ckw["vmem_limit_bytes"] = int(min(2 * est, 64 * 1024 * 1024))

    out = pl.pallas_call(
        kernel,
        out_shape=jax.ShapeDtypeStruct((1, n_pad), jnp.float32),
        grid_spec=pl.GridSpec(grid=(grid,), in_specs=in_specs, out_specs=out_spec),
        compiler_params=pltpu.CompilerParams(**ckw),
    )(x, *folded_params)

    return out[0, :n].reshape(n, 1)


# ---------------------------------------------------------------------------
# Pure-JAX eval-mode reference on the RAW (unfolded, f32) parameters
# ---------------------------------------------------------------------------
def ffn_classifier_reference(x, hidden_params, out_params):
    h = x
    for (w, b, gamma, beta, rmean, rvar) in hidden_params:
        h = h @ w.T + b
        h = jnp.maximum(h, 0.0)
        h = (h - rmean) / jnp.sqrt(rvar + BN_EPS) * gamma + beta
        # Dropout: identity in eval mode
    w_out, b_out = out_params
    return jax.nn.sigmoid(h @ w_out.T + b_out).reshape(-1, 1)


if __name__ == "__main__":
    key = jax.random.PRNGKey(0)
    input_dim = 16
    architecture = [32, 16]     # two hidden blocks: Linear->ReLU->BN->Dropout
    batch = 256                 # one grid step on v5e/v6e, two on v7x

    key, kx, kp = jax.random.split(key, 3)
    x = jax.random.normal(kx, (batch, input_dim), jnp.float32)

    hidden_params, out_params = init_ffn_params(kp, input_dim, architecture)
    folded = fold_bn_into_linears(hidden_params, out_params)

    out = ffn_classifier_forward(x, folded, num_hidden_layers=len(architecture))
    out = jax.block_until_ready(out)

    ref = ffn_classifier_reference(x, hidden_params, out_params)
    assert out.shape == (batch, 1)
    assert bool(jnp.all(jnp.isfinite(out))), "non-finite output"
    # bf16 x/weights + approx reciprocal in the sigmoid -> loosened tolerance
    # vs the f32 eval-mode reference.
    err = float(jnp.max(jnp.abs(out - ref)))
    assert err < 3e-2, f"max abs err {err}"

    print("KERNEL_OK")
</pallas_src>

<mosaic_0001>
module attributes {stable_mosaic.version = 11 : i64} {
  func.func @kernel(%arg0: i32, %arg1: memref<256x16xbf16, #tpu.memory_space<vmem>>, %arg2: memref<32x16xbf16, #tpu.memory_space<vmem>>, %arg3: memref<32x1xf32, #tpu.memory_space<vmem>>, %arg4: memref<16x32xbf16, #tpu.memory_space<vmem>>, %arg5: memref<16x1xf32, #tpu.memory_space<vmem>>, %arg6: memref<1x16xbf16, #tpu.memory_space<vmem>>, %arg7: memref<1x1xf32, #tpu.memory_space<vmem>>, %arg8: memref<1x256xf32, #tpu.memory_space<vmem>>) attributes {dimension_semantics = [#tpu.dimension_semantics<parallel>], iteration_bounds = array<i64: 1>, scalar_prefetch = 0 : i64, scratch_operands = 0 : i64, tpu.core_type = #tpu.core_type<tc>, window_params = [{transform_indices = @transform_0, window_bounds = array<i64: 256, 16>}, {pipeline_mode = #tpu.pipeline_mode<synchronous>, transform_indices = @transform_1, window_bounds = array<i64: 32, 16>}, {pipeline_mode = #tpu.pipeline_mode<synchronous>, transform_indices = @transform_2, window_bounds = array<i64: 32, 1>}, {pipeline_mode = #tpu.pipeline_mode<synchronous>, transform_indices = @transform_3, window_bounds = array<i64: 16, 32>}, {pipeline_mode = #tpu.pipeline_mode<synchronous>, transform_indices = @transform_4, window_bounds = array<i64: 16, 1>}, {pipeline_mode = #tpu.pipeline_mode<synchronous>, transform_indices = @transform_5, window_bounds = array<i64: 1, 16>}, {pipeline_mode = #tpu.pipeline_mode<synchronous>, transform_indices = @transform_6, window_bounds = array<i64: 1, 1>}, {transform_indices = @transform_7, window_bounds = array<i64: 1, 256>}]} {
    %c0 = arith.constant 0 : index
    %c0_0 = arith.constant 0 : index
    %0 = vector.load %arg1[%c0, %c0_0] : memref<256x16xbf16, #tpu.memory_space<vmem>>, vector<256x16xbf16>
    %c0_1 = arith.constant 0 : index
    %c0_2 = arith.constant 0 : index
    %1 = vector.load %arg2[%c0_1, %c0_2] : memref<32x16xbf16, #tpu.memory_space<vmem>>, vector<32x16xbf16>
    %c0_3 = arith.constant 0 : index
    %c0_4 = arith.constant 0 : index
    %2 = vector.load %arg3[%c0_3, %c0_4] : memref<32x1xf32, #tpu.memory_space<vmem>>, vector<32x1xf32>
    %cst = arith.constant dense<0.000000e+00> : vector<32x256xf32>
    %3 = tpu.matmul %1, %0, %cst {dimension_numbers = #tpu.dot_dimension_numbers<[1], [1], [0], [0], [0, 0, 1, 0], [], []>} : vector<32x16xbf16>, vector<256x16xbf16>, vector<32x256xf32> -> vector<32x256xf32>
    %4 = vector.broadcast %2 : vector<32x1xf32> to vector<32x256xf32>
    %5 = arith.addf %3, %4 : vector<32x256xf32>
    %cst_5 = arith.constant 0.000000e+00 : f32
    %6 = vector.broadcast %cst_5 : f32 to vector<32x256xf32>
    %7 = arith.maximumf %5, %6 : vector<32x256xf32>
    %c0_6 = arith.constant 0 : index
    %c0_7 = arith.constant 0 : index
    %8 = vector.load %arg4[%c0_6, %c0_7] : memref<16x32xbf16, #tpu.memory_space<vmem>>, vector<16x32xbf16>
    %c0_8 = arith.constant 0 : index
    %c0_9 = arith.constant 0 : index
    %9 = vector.load %arg5[%c0_8, %c0_9] : memref<16x1xf32, #tpu.memory_space<vmem>>, vector<16x1xf32>
    %10 = arith.extf %8 : vector<16x32xbf16> to vector<16x32xf32>
    %cst_10 = arith.constant dense<0.000000e+00> : vector<16x256xf32>
    %11 = tpu.matmul %10, %7, %cst_10 {dimension_numbers = #tpu.dot_dimension_numbers<[1], [0], [0], [1], [0, 0, 1, 1], [], []>} : vector<16x32xf32>, vector<32x256xf32>, vector<16x256xf32> -> vector<16x256xf32>
    %12 = vector.broadcast %9 : vector<16x1xf32> to vector<16x256xf32>
    %13 = arith.addf %11, %12 : vector<16x256xf32>
    %cst_11 = arith.constant 0.000000e+00 : f32
    %14 = vector.broadcast %cst_11 : f32 to vector<16x256xf32>
    %15 = arith.maximumf %13, %14 : vector<16x256xf32>
    %c0_12 = arith.constant 0 : index
    %c0_13 = arith.constant 0 : index
    %16 = vector.load %arg6[%c0_12, %c0_13] : memref<1x16xbf16, #tpu.memory_space<vmem>>, vector<1x16xbf16>
    %c0_14 = arith.constant 0 : index
    %c0_15 = arith.constant 0 : index
    %17 = vector.load %arg7[%c0_14, %c0_15] : memref<1x1xf32, #tpu.memory_space<vmem>>, vector<1x1xf32>
    %18 = arith.extf %16 : vector<1x16xbf16> to vector<1x16xf32>
    %cst_16 = arith.constant dense<0.000000e+00> : vector<1x256xf32>
    %19 = tpu.matmul %18, %15, %cst_16 {dimension_numbers = #tpu.dot_dimension_numbers<[1], [0], [0], [1], [0, 0, 1, 1], [], []>} : vector<1x16xf32>, vector<16x256xf32>, vector<1x256xf32> -> vector<1x256xf32>
    %20 = vector.broadcast %17 : vector<1x1xf32> to vector<1x256xf32>
    %21 = arith.addf %19, %20 : vector<1x256xf32>
    %cst_17 = arith.constant 0.000000e+00 : f32
    %22 = vector.broadcast %cst_17 : f32 to vector<1x256xf32>
    %23 = arith.subf %22, %21 : vector<1x256xf32>
    %24 = math.exp %23 : vector<1x256xf32>
    %cst_18 = arith.constant 1.000000e+00 : f32
    %25 = vector.broadcast %cst_18 : f32 to vector<1x256xf32>
    %26 = arith.addf %25, %24 : vector<1x256xf32>
    %27 = tpu.reciprocal %26 {approx = true} : vector<1x256xf32> -> vector<1x256xf32>
    %c0_19 = arith.constant 0 : index
    %c0_20 = arith.constant 0 : index
    %28 = vector.load %arg8[%c0_19, %c0_20] : memref<1x256xf32, #tpu.memory_space<vmem>>, vector<1x256xf32>
    tpu.vector_store %arg8[%c0_19, %c0_20], %27 {strides = array<i32>} : memref<1x256xf32, #tpu.memory_space<vmem>>, vector<1x256xf32>,
    return
  }
  func.func @transform_0(%arg0: i32) -> (i32, i32) {
    %c0_i32 = arith.constant 0 : i32
    %c0_i32_0 = arith.constant 0 : i32
    return %arg0, %c0_i32 : i32, i32
  }
  func.func @transform_1(%arg0: i32) -> (i32, i32) {
    %c0_i32 = arith.constant 0 : i32
    %c0_i32_0 = arith.constant 0 : i32
    %c0_i32_1 = arith.constant 0 : i32
    return %c0_i32, %c0_i32_0 : i32, i32
  }
  func.func @transform_2(%arg0: i32) -> (i32, i32) {
    %c0_i32 = arith.constant 0 : i32
    %c0_i32_0 = arith.constant 0 : i32
    %c0_i32_1 = arith.constant 0 : i32
    return %c0_i32, %c0_i32_0 : i32, i32
  }
  func.func @transform_3(%arg0: i32) -> (i32, i32) {
    %c0_i32 = arith.constant 0 : i32
    %c0_i32_0 = arith.constant 0 : i32
    %c0_i32_1 = arith.constant 0 : i32
    return %c0_i32, %c0_i32_0 : i32, i32
  }
  func.func @transform_4(%arg0: i32) -> (i32, i32) {
    %c0_i32 = arith.constant 0 : i32
    %c0_i32_0 = arith.constant 0 : i32
    %c0_i32_1 = arith.constant 0 : i32
    return %c0_i32, %c0_i32_0 : i32, i32
  }
  func.func @transform_5(%arg0: i32) -> (i32, i32) {
    %c0_i32 = arith.constant 0 : i32
    %c0_i32_0 = arith.constant 0 : i32
    %c0_i32_1 = arith.constant 0 : i32
    return %c0_i32, %c0_i32_0 : i32, i32
  }
  func.func @transform_6(%arg0: i32) -> (i32, i32) {
    %c0_i32 = arith.constant 0 : i32
    %c0_i32_0 = arith.constant 0 : i32
    %c0_i32_1 = arith.constant 0 : i32
    return %c0_i32, %c0_i32_0 : i32, i32
  }
  func.func @transform_7(%arg0: i32) -> (i32, i32) {
    %c0_i32 = arith.constant 0 : i32
    %c0_i32_0 = arith.constant 0 : i32
    return %c0_i32, %arg0 : i32, i32
  }
}

</mosaic_0001>

<llo_original>
// kernel: tpu_custom_call.1
$region0: #{tpu_custom_call.1}
  #allocation0 [shape = 'u32[]', space=smem, size = 0x4, offset = 0x4, fixed_abs, tag = 'smem constant byte address 0x4 - core index']
  #allocation1 [shape = 'u32[144,128]{1,0:T(1,128)}', space=vmem, size = 0x12000, scoped, tag = 'internal scratch']
  #allocation2 [shape = 'f32[1,1]{1,0:T(1,128)S(1)}', space=vmem, size = 0x200, scoped, tag = 'scoped memory for tpu_custom_call.1']
  %s0 = inlined_call_operand.vmem [shape: bf16[256,16], index: 0, kind: input, shape index: {}]
  %s1 = inlined_call_operand.vmem [shape: bf16[32,16], index: 1, kind: input, shape index: {}]
  %s2 = inlined_call_operand.vmem [shape: f32[32,1], index: 2, kind: input, shape index: {}]
  %s3 = inlined_call_operand.vmem [shape: bf16[16,32], index: 3, kind: input, shape index: {}]
  %s4 = inlined_call_operand.vmem [shape: f32[16,1], index: 4, kind: input, shape index: {}]
  %s5 = inlined_call_operand.vmem [shape: bf16[1,16], index: 5, kind: input, shape index: {}]
  %s6 = inlined_call_operand.<no memory space> [shape: f32[1,1], index: 6, kind: input, shape index: {}]
  %s7 = inlined_call_operand.hbm [shape: f32[1,256], index: 7, kind: output, shape index: {}]
  %s8 = sld [smem:[#allocation0]]
  $region38: #{tpu_custom_call.1} parent=0
    _
  %s10 = ssub.s32 1, %s8
  %s11 = scalar_select 0, %s10, %s8
  %v12 = vstv %s6
  %13 = vst [vmem:[#allocation2] sm:$0x1] %v12
  $region1: #{tpu_custom_call.1} parent=0
    #allocation3 [shape = 'u8[1024]{0}', space=vmem, size = 0x400, scoped, tag = 'output window, operand 0, single buffered']
    #allocation4 [shape = 's32[1]{0}', space=sflag, size = 0x4, scoped, tag = 'scoped memory for tpu_custom_call.1']
    %14 = vsyncpa [#allocation4], 0
    // Predicated region
    $region2: #{tpu_custom_call.1} parent=1 // pred_check
      _
    $region3: #{tpu_custom_call.1} parent=1 // pred_check_branch
      %16 = sbr.rel (0) target = $region5
    $region4: #{tpu_custom_call.1} parent=1 // pred_region
      _
    $region5: #{tpu_custom_call.1} parent=1 // pred_fallthru
      _
    // Predicated region
    $region6: #{tpu_custom_call.1} parent=1 // pred_check
      _
    $region7: #{tpu_custom_call.1} parent=1 // pred_check_branch
      %18 = sbr.rel (0) target = $region9
    $region8: #{tpu_custom_call.1} parent=1 // pred_region
      _
    $region9: #{tpu_custom_call.1} parent=1 // pred_fallthru
      _
    // Predicated region
    $region10: #{tpu_custom_call.1} parent=1 // pred_check
      _
    $region11: #{tpu_custom_call.1} parent=1 // pred_check_branch
      %20 = sbr.rel (0) target = $region13
    $region12: #{tpu_custom_call.1} parent=1 // pred_region
      _
    $region13: #{tpu_custom_call.1} parent=1 // pred_fallthru
      _
    // Predicated region
    $region14: #{tpu_custom_call.1} parent=1 // pred_check
      _
    $region15: #{tpu_custom_call.1} parent=1 // pred_check_branch
      %22 = sbr.rel (0) target = $region17
    $region16: #{tpu_custom_call.1} parent=1 // pred_region
      _
    $region17: #{tpu_custom_call.1} parent=1 // pred_fallthru
      _
    // Predicated region
    $region18: #{tpu_custom_call.1} parent=1 // pred_check
      _
    $region19: #{tpu_custom_call.1} parent=1 // pred_check_branch
      %24 = sbr.rel (0) target = $region21
    $region20: #{tpu_custom_call.1} parent=1 // pred_region
      _
    $region21: #{tpu_custom_call.1} parent=1 // pred_fallthru
      _
    // Predicated region
    $region22: #{tpu_custom_call.1} parent=1 // pred_check
      _
    $region23: #{tpu_custom_call.1} parent=1 // pred_check_branch
      %26 = sbr.rel (0) target = $region25
    $region24: #{tpu_custom_call.1} parent=1 // pred_region
      _
    $region25: #{tpu_custom_call.1} parent=1 // pred_fallthru
      _
    // Predicated region
    $region26: #{tpu_custom_call.1} parent=1 // pred_check
      _
    $region27: #{tpu_custom_call.1} parent=1 // pred_check_branch
      %28 = sbr.rel (0) target = $region29
    $region28: #{tpu_custom_call.1} parent=1 // pred_region
      _
    $region29: #{tpu_custom_call.1} parent=1 // pred_fallthru
      _
    %v30 = vld [vmem:[%s0] sm:$0xf]
    %v31 = vld [vmem:[%s0 + $0x4] sm:$0xf]
    %v32 = vld [vmem:[%s0 + $0x8] sm:$0xf]
    %v33 = vld [vmem:[%s0 + $0xc] sm:$0xf]
    %v34 = vld [vmem:[%s0 + $0x10] sm:$0xf]
    %v35 = vld [vmem:[%s0 + $0x14] sm:$0xf]
    %v36 = vld [vmem:[%s0 + $0x18] sm:$0xf]
    %v37 = vld [vmem:[%s0 + $0x1c] sm:$0xf]
    %v38 = vld [vmem:[%s0 + $0x20] sm:$0xf]
    %v39 = vld [vmem:[%s0 + $0x24] sm:$0xf]
    %v40 = vld [vmem:[%s0 + $0x28] sm:$0xf]
    %v41 = vld [vmem:[%s0 + $0x2c] sm:$0xf]
    %v42 = vld [vmem:[%s0 + $0x30] sm:$0xf]
    %v43 = vld [vmem:[%s0 + $0x34] sm:$0xf]
    %v44 = vld [vmem:[%s0 + $0x38] sm:$0xf]
    %v45 = vld [vmem:[%s0 + $0x3c] sm:$0xf]
    %v46 = vld [vmem:[%s0 + $0x40] sm:$0xf]
    %v47 = vld [vmem:[%s0 + $0x44] sm:$0xf]
    %v48 = vld [vmem:[%s0 + $0x48] sm:$0xf]
    %v49 = vld [vmem:[%s0 + $0x4c] sm:$0xf]
    %v50 = vld [vmem:[%s0 + $0x50] sm:$0xf]
    %v51 = vld [vmem:[%s0 + $0x54] sm:$0xf]
    %v52 = vld [vmem:[%s0 + $0x58] sm:$0xf]
    %v53 = vld [vmem:[%s0 + $0x5c] sm:$0xf]
    %v54 = vld [vmem:[%s0 + $0x60] sm:$0xf]
    %v55 = vld [vmem:[%s0 + $0x64] sm:$0xf]
    %v56 = vld [vmem:[%s0 + $0x68] sm:$0xf]
    %v57 = vld [vmem:[%s0 + $0x6c] sm:$0xf]
    %v58 = vld [vmem:[%s0 + $0x70] sm:$0xf]
    %v59 = vld [vmem:[%s0 + $0x74] sm:$0xf]
    %v60 = vld [vmem:[%s0 + $0x78] sm:$0xf]
    %v61 = vld [vmem:[%s0 + $0x7c] sm:$0xf]
    %v62 = vld [vmem:[%s1] sm:$0xf]
    %v63 = vld [vmem:[%s1 + $0x4] sm:$0xf]
    %v64 = vld [vmem:[%s1 + $0x8] sm:$0xf]
    %v65 = vld [vmem:[%s1 + $0xc] sm:$0xf]
    %v66 = vld [vmem:[%s2] sm:$0xff]
    %v67 = vld [vmem:[%s2 + $0x8] sm:$0xff]
    %v68 = vld [vmem:[%s2 + $0x10] sm:$0xff]
    %v69 = vld [vmem:[%s2 + $0x18] sm:$0xff]
    %71 = vset.pattern.permute.xlu0 0
    %72 = vperm.xlu0 %71, %v66
    %v73 = vpop.permute.xlu0 %72
    %76 = vset.pattern.permute.xlu0 0
    %77 = vperm.xlu0 %76, %v67
    %v78 = vpop.permute.xlu0 %77
    %81 = vset.pattern.permute.xlu0 0
    %82 = vperm.xlu0 %81, %v68
    %v83 = vpop.permute.xlu0 %82
    %86 = vset.pattern.permute.xlu0 0
    %87 = vperm.xlu0 %86, %v69
    %v88 = vpop.permute.xlu0 %87
    %v94 = vunpack.c.l.b16 %v62
    %v95 = vunpack.c.l.b16 %v63
    %v96 = vunpack.c.l.b16 %v64
    %v97 = vunpack.c.l.b16 %v65
    %v98 = vpack.c.b16 %v95, %v94
    %v99 = vpack.c.b16 %v97, %v96
    %v132 = vunpack.c.l.b16 %v30
    %v133 = vunpack.c.l.b16 %v31
    %v134 = vunpack.c.l.b16 %v32
    %v135 = vunpack.c.l.b16 %v33
    %v136 = vunpack.c.l.b16 %v34
    %v137 = vunpack.c.l.b16 %v35
    %v138 = vunpack.c.l.b16 %v36
    %v139 = vunpack.c.l.b16 %v37
    %v140 = vunpack.c.l.b16 %v38
    %v141 = vunpack.c.l.b16 %v39
    %v142 = vunpack.c.l.b16 %v40
    %v143 = vunpack.c.l.b16 %v41
    %v144 = vunpack.c.l.b16 %v42
    %v145 = vunpack.c.l.b16 %v43
    %v146 = vunpack.c.l.b16 %v44
    %v147 = vunpack.c.l.b16 %v45
    %v148 = vunpack.c.l.b16 %v46
    %v149 = vunpack.c.l.b16 %v47
    %v150 = vunpack.c.l.b16 %v48
    %v151 = vunpack.c.l.b16 %v49
    %v152 = vunpack.c.l.b16 %v50
    %v153 = vunpack.c.l.b16 %v51
    %v154 = vunpack.c.l.b16 %v52
    %v155 = vunpack.c.l.b16 %v53
    %v156 = vunpack.c.l.b16 %v54
    %v157 = vunpack.c.l.b16 %v55
    %v158 = vunpack.c.l.b16 %v56
    %v159 = vunpack.c.l.b16 %v57
    %v160 = vunpack.c.l.b16 %v58
    %v161 = vunpack.c.l.b16 %v59
    %v162 = vunpack.c.l.b16 %v60
    %v163 = vunpack.c.l.b16 %v61
    %v164 = vpack.c.b16 %v133, %v132
    %v165 = vpack.c.b16 %v135, %v134
    %v166 = vpack.c.b16 %v137, %v136
    %v167 = vpack.c.b16 %v139, %v138
    %v168 = vpack.c.b16 %v141, %v140
    %v169 = vpack.c.b16 %v143, %v142
    %v170 = vpack.c.b16 %v145, %v144
    %v171 = vpack.c.b16 %v147, %v146
    %v172 = vpack.c.b16 %v149, %v148
    %v173 = vpack.c.b16 %v151, %v150
    %v174 = vpack.c.b16 %v153, %v152
    %v175 = vpack.c.b16 %v155, %v154
    %v176 = vpack.c.b16 %v157, %v156
    %v177 = vpack.c.b16 %v159, %v158
    %v178 = vpack.c.b16 %v161, %v160
    %v179 = vpack.c.b16 %v163, %v162
    %vm180 = vcmask 130048
    %v182 = vsel %vm180, %v98, 0
    %v185 = vsel %vm180, %v99, 0
    %v188 = vsel %vm180, %v164, 0
    %v191 = vsel %vm180, %v165, 0
    %v194 = vsel %vm180, %v166, 0
    %v197 = vsel %vm180, %v167, 0
    %v200 = vsel %vm180, %v168, 0
    %v203 = vsel %vm180, %v169, 0
    %v206 = vsel %vm180, %v170, 0
    %v209 = vsel %vm180, %v171, 0
    %v212 = vsel %vm180, %v172, 0
    %v215 = vsel %vm180, %v173, 0
    %v218 = vsel %vm180, %v174, 0
    %v221 = vsel %vm180, %v175, 0
    %v224 = vsel %vm180, %v176, 0
    %v227 = vsel %vm180, %v177, 0
    %v230 = vsel %vm180, %v178, 0
    %v233 = vsel %vm180, %v179, 0
    %235 = vmatprep.subr.bf16.mxu0 0
    %236 = vmatpush1.bf16.xpose.msra.mxu0 %v209
    %237 = vmatprep.subr.bf16.mxu0 0
    %238 = vmatpush1.bf16.xpose.msra.mxu0 %v206
    %239 = vmatprep.subr.bf16.mxu0 0
    %240 = vmatpush1.bf16.xpose.msra.mxu0 %v203
    %241 = vmatprep.subr.bf16.mxu0 0
    %242 = vmatpush1.bf16.xpose.msra.mxu0 %v200
    %243 = vmatprep.subr.bf16.mxu0 0
    %244 = vmatpush1.bf16.xpose.msra.mxu0 %v197
    %245 = vmatprep.subr.bf16.mxu0 0
    %246 = vmatpush1.bf16.xpose.msra.mxu0 %v194
    %247 = vmatprep.subr.bf16.mxu0 0
    %248 = vmatpush1.bf16.xpose.msra.mxu0 %v191
    %249 = vmatprep.subr.bf16.mxu0 0
    %250 = vmatpush1.bf16.xpose.msra.mxu0 %v188
    %251 = vmatprep.subr.bf16.mxu0 0
    %252 = vmatpush2.bf16.xpose.msra.mxu0 %v233
    %253 = vmatprep.subr.bf16.mxu0 0
    %254 = vmatpush2.bf16.xpose.msra.mxu0 %v230
    %255 = vmatprep.subr.bf16.mxu0 0
    %256 = vmatpush2.bf16.xpose.msra.mxu0 %v227
    %257 = vmatprep.subr.bf16.mxu0 0
    %258 = vmatpush2.bf16.xpose.msra.mxu0 %v224
    %259 = vmatprep.subr.bf16.mxu0 0
    %260 = vmatpush2.bf16.xpose.msra.mxu0 %v221
    %261 = vmatprep.subr.bf16.mxu0 0
    %262 = vmatpush2.bf16.xpose.msra.mxu0 %v218
    %263 = vmatprep.subr.bf16.mxu0 0
    %264 = vmatpush2.bf16.xpose.msra.mxu0 %v215
    %265 = vmatprep.subr.bf16.mxu0 0
    %266 = vmatpush2.bf16.xpose.msra.mxu0 %v212
    %267 = vmatprep.mubr.bf16.mxu0 0
    %268 = vmatmul.mubr.bf16.gmra.mxu0 %v182
    %v269 = vpop.f32.mrf.mxu0
    %v270 = vadd.f32 %v73, %v269
    %v271 = vpop.f32.mrf.mxu0
    %v272 = vadd.f32 %v73, %v271
    %v273 = vpop.f32.mrf.mxu0
    %v274 = vadd.f32 %v78, %v273
    %v275 = vpop.f32.mrf.mxu0
    %v276 = vadd.f32 %v78, %v275
    %277 = vmatprep.mubr.bf16.mxu0 0
    %278 = vmatmul.mubr.bf16.gmra.mxu0 %v185
    %v279 = vpop.f32.mrf.mxu0
    %v280 = vadd.f32 %v83, %v279
    %v281 = vpop.f32.mrf.mxu0
    %v282 = vadd.f32 %v83, %v281
    %v283 = vpop.f32.mrf.mxu0
    %v284 = vadd.f32 %v88, %v283
    %v285 = vpop.f32.mrf.mxu0
    %v286 = vadd.f32 %v88, %v285
    %287 = vdwg.mxu0
    %v288 = vmax.f32 %v270, 0.0
    %v289 = vmax.f32 %v272, 0.0
    %v290 = vmax.f32 %v274, 0.0
    %v291 = vmax.f32 %v276, 0.0
    %v292 = vmax.f32 %v280, 0.0
    %v293 = vmax.f32 %v282, 0.0
    %v294 = vmax.f32 %v284, 0.0
    %v295 = vmax.f32 %v286, 0.0
    %v296 = vld [vmem:[%s3] sm:$0xf]
    %v297 = vld [vmem:[%s3 + $0x4] sm:$0xf]
    %v298 = vld [vmem:[%s4] sm:$0xff]
    %v299 = vld [vmem:[%s4 + $0x8] sm:$0xff]
    %v300 = vunpack.c.l.bf16 %v296
    %v301 = vunpack.c.l.bf16 %v297
    %303 = vset.pattern.permute.xlu0 0
    %304 = vperm.xlu0 %303, %v298
    %v305 = vpop.permute.xlu0 %304
    %308 = vset.pattern.permute.xlu0 0
    %309 = vperm.xlu0 %308, %v299
    %v310 = vpop.permute.xlu0 %309
    %vm312 = vcmask 261120
    %v314 = vsel %vm312, %v300, 0
    %v317 = vsel %vm312, %v301, 0
    %319 = vmatprep.subr.mxu0 0.0
    %320 = vmatpush1.msra.mxu0 0.0
    %321 = vmatprep.subr.mxu0 0.0
    %322 = vmatpush1.msra.mxu0 0.0
    %323 = vmatprep.subr.mxu0 0.0
    %324 = vmatpush1.msra.mxu0 0.0
    %325 = vmatprep.subr.mxu0 0.0
    %326 = vmatpush1.msra.mxu0 0.0
    %327 = vmatprep.subr.mxu0 0.0
    %328 = vmatpush1.msra.mxu0 0.0
    %329 = vmatprep.subr.mxu0 0.0
    %330 = vmatpush1.msra.mxu0 0.0
    %331 = vmatprep.subr.mxu0 0.0
    %332 = vmatpush1.msra.mxu0 0.0
    %333 = vmatprep.subr.mxu0 0.0
    %334 = vmatpush1.msra.mxu0 0.0
    %335 = vmatprep.subr.mxu0 0.0
    %336 = vmatpush1.msra.mxu0 0.0
    %337 = vmatprep.subr.mxu0 0.0
    %338 = vmatpush1.msra.mxu0 0.0
    %339 = vmatprep.subr.mxu0 0.0
    %340 = vmatpush1.msra.mxu0 0.0
    %341 = vmatprep.subr.mxu0 0.0
    %342 = vmatpush1.msra.mxu0 0.0
    %343 = vmatprep.subr.mxu0 %v295
    %344 = vmatpush1.msra.mxu0 %v294
    %345 = vmatprep.subr.mxu0 %v293
    %346 = vmatpush1.msra.mxu0 %v292
    %347 = vmatprep.subr.mxu0 %v291
    %348 = vmatpush1.msra.mxu0 %v290
    %349 = vmatprep.subr.mxu0 %v289
    %350 = vmatpush1.msra.mxu0 %v288
    %351 = vmatprep.subr.mxu0 0.0
    %352 = vmatpush2.msra.mxu0 0.0
    %353 = vmatprep.subr.mxu0 0.0
    %354 = vmatpush2.msra.mxu0 0.0
    %355 = vmatprep.subr.mxu0 0.0
    %356 = vmatpush2.msra.mxu0 0.0
    %357 = vmatprep.subr.mxu0 0.0
    %358 = vmatpush2.msra.mxu0 0.0
    %359 = vmatprep.subr.mxu0 0.0
    %360 = vmatpush2.msra.mxu0 0.0
    %361 = vmatprep.subr.mxu0 0.0
    %362 = vmatpush2.msra.mxu0 0.0
    %363 = vmatprep.subr.mxu0 0.0
    %364 = vmatpush2.msra.mxu0 0.0
    %365 = vmatprep.subr.mxu0 0.0
    %366 = vmatpush2.msra.mxu0 0.0
    %367 = vmatprep.subr.mxu0 0.0
    %368 = vmatpush2.msra.mxu0 0.0
    %369 = vmatprep.subr.mxu0 0.0
    %370 = vmatpush2.msra.mxu0 0.0
    %371 = vmatprep.subr.mxu0 0.0
    %372 = vmatpush2.msra.mxu0 0.0
    %373 = vmatprep.subr.mxu0 0.0
    %374 = vmatpush2.msra.mxu0 0.0
    %375 = vmatprep.subr.mxu0 0.0
    %376 = vmatpush2.msra.mxu0 0.0
    %377 = vmatprep.subr.mxu0 0.0
    %378 = vmatpush2.msra.mxu0 0.0
    %379 = vmatprep.subr.mxu0 0.0
    %380 = vmatpush2.msra.mxu0 0.0
    %381 = vmatprep.subr.mxu0 0.0
    %382 = vmatpush2.msra.mxu0 0.0
    %383 = vmatprep.mubr.f32.mxu0 0.0
    %384 = vmatmul.mubr.f32.gmra.mxu0 %v314
    %v385 = vpop.f32.mrf.mxu0
    %v386 = vadd.f32 %v305, %v385
    %v387 = vpop.f32.mrf.mxu0
    %v388 = vadd.f32 %v305, %v387
    %389 = vmatprep.mubr.f32.mxu0 0.0
    %390 = vmatmul.mubr.f32.gmra.mxu0 %v317
    %v391 = vpop.f32.mrf.mxu0
    %v392 = vadd.f32 %v310, %v391
    %v393 = vpop.f32.mrf.mxu0
    %v394 = vadd.f32 %v310, %v393
    %395 = vdwg.mxu0
    %v396 = vmax.f32 %v386, 0.0
    %v397 = vmax.f32 %v388, 0.0
    %v398 = vmax.f32 %v392, 0.0
    %v399 = vmax.f32 %v394, 0.0
    %v400 = vld [vmem:[%s5] sm:$0x1]
    %v401 = vld [vmem:[#allocation2] sm:$0x1]
    %v402 = vunpack.c.l.bf16 %v400
    %404 = vset.pattern.permute.xlu0 0
    %405 = vperm.xlu0 %404, %v401
    %v406 = vpop.permute.xlu0 %405
    %v408 = vlaneseq
    %v409 = vshrl.u32 %v408, 7
    %v410 = vsub.s32 0, %v409
    %v411 = vrot.slane %v406, %v410
    %v413 = vsel %vm180, %v402, 0
    %415 = vmatprep.subr.mxu0 0.0
    %416 = vmatpush1.msra.mxu0 0.0
    %417 = vmatprep.subr.mxu0 0.0
    %418 = vmatpush1.msra.mxu0 0.0
    %419 = vmatprep.subr.mxu0 0.0
    %420 = vmatpush1.msra.mxu0 0.0
    %421 = vmatprep.subr.mxu0 0.0
    %422 = vmatpush1.msra.mxu0 0.0
    %423 = vmatprep.subr.mxu0 0.0
    %424 = vmatpush1.msra.mxu0 0.0
    %425 = vmatprep.subr.mxu0 0.0
    %426 = vmatpush1.msra.mxu0 0.0
    %427 = vmatprep.subr.mxu0 0.0
    %428 = vmatpush1.msra.mxu0 0.0
    %429 = vmatprep.subr.mxu0 0.0
    %430 = vmatpush1.msra.mxu0 0.0
    %431 = vmatprep.subr.mxu0 0.0
    %432 = vmatpush1.msra.mxu0 0.0
    %433 = vmatprep.subr.mxu0 0.0
    %434 = vmatpush1.msra.mxu0 0.0
    %435 = vmatprep.subr.mxu0 0.0
    %436 = vmatpush1.msra.mxu0 0.0
    %437 = vmatprep.subr.mxu0 0.0
    %438 = vmatpush1.msra.mxu0 0.0
    %439 = vmatprep.subr.mxu0 0.0
    %440 = vmatpush1.msra.mxu0 0.0
    %441 = vmatprep.subr.mxu0 0.0
    %442 = vmatpush1.msra.mxu0 0.0
    %443 = vmatprep.subr.mxu0 %v399
    %444 = vmatpush1.msra.mxu0 %v398
    %445 = vmatprep.subr.mxu0 %v397
    %446 = vmatpush1.msra.mxu0 %v396
    %447 = vmatprep.subr.mxu0 0.0
    %448 = vmatpush2.msra.mxu0 0.0
    %449 = vmatprep.subr.mxu0 0.0
    %450 = vmatpush2.msra.mxu0 0.0
    %451 = vmatprep.subr.mxu0 0.0
    %452 = vmatpush2.msra.mxu0 0.0
    %453 = vmatprep.subr.mxu0 0.0
    %454 = vmatpush2.msra.mxu0 0.0
    %455 = vmatprep.subr.mxu0 0.0
    %456 = vmatpush2.msra.mxu0 0.0
    %457 = vmatprep.subr.mxu0 0.0
    %458 = vmatpush2.msra.mxu0 0.0
    %459 = vmatprep.subr.mxu0 0.0
    %460 = vmatpush2.msra.mxu0 0.0
    %461 = vmatprep.subr.mxu0 0.0
    %462 = vmatpush2.msra.mxu0 0.0
    %463 = vmatprep.subr.mxu0 0.0
    %464 = vmatpush2.msra.mxu0 0.0
    %465 = vmatprep.subr.mxu0 0.0
    %466 = vmatpush2.msra.mxu0 0.0
    %467 = vmatprep.subr.mxu0 0.0
    %468 = vmatpush2.msra.mxu0 0.0
    %469 = vmatprep.subr.mxu0 0.0
    %470 = vmatpush2.msra.mxu0 0.0
    %471 = vmatprep.subr.mxu0 0.0
    %472 = vmatpush2.msra.mxu0 0.0
    %473 = vmatprep.subr.mxu0 0.0
    %474 = vmatpush2.msra.mxu0 0.0
    %475 = vmatprep.subr.mxu0 0.0
    %476 = vmatpush2.msra.mxu0 0.0
    %477 = vmatprep.subr.mxu0 0.0
    %478 = vmatpush2.msra.mxu0 0.0
    %479 = vmatprep.mubr.f32.mxu0 0.0
    %480 = vmatmul.mubr.f32.gmra.mxu0 %v413
    %v481 = vpop.f32.mrf.mxu0
    %v482 = vadd.f32 %v411, %v481
    %v483 = vpop.f32.mrf.mxu0
    %v484 = vadd.f32 %v411, %v483
    %485 = vdwg.mxu0
    %v486 = vsub.f32 0.0, %v482
    %v487 = vsub.f32 0.0, %v484
    %v488 = vmul.f32 %v486, 1.442695
    %v489 = vpow.pop %v488
    %v490 = vmul.f32 %v487, 1.442695
    %v491 = vpow.pop %v490
    %v492 = vadd.f32 %v489, 1.0
    %v493 = vadd.f32 %v491, 1.0
    %v494 = vrcp.pop %v492
    %v495 = vrcp.pop %v493
    %v498 = vcombine.low %v494, %v495
    %v500 = vunpack.c.l.s4 1966171168
    %v501 = vunpack.c.0.s8 %v500
    %v502 = vlaneseq
    %v503 = vshrl.u32 %v502, 7
    %v504 = vsub.s32 %v501, %v503
    %v505 = vrot.slane %v498, %v504
    %v507 = vunpack.c.l.s4 1966171168
    %v508 = vunpack.c.0.s8 %v507
    %v509 = vlaneseq
    %v510 = vshrl.u32 %v509, 7
    %v511 = vsub.s32 %v508, %v510
    %v512 = vrot.slane %v505, %v511
    %v514 = vlaneseq
    %vm515 = vcmp.ge.s32.totalorder %v514, 0
    %vm516 = vcmp.lt.s32.totalorder %v514, 256
    %vm517 = vmand %vm515, %vm516
    %518 = vst.msk [vmem:[#allocation3] sm:$0x3] %vm517, %v512
    // Predicated region
    $region30: #{tpu_custom_call.1} parent=1 // pred_check
      _
    $region31: #{tpu_custom_call.1} parent=1 // pred_check_branch
      %520 = sbr.rel (0) target = $region33
    $region32: #{tpu_custom_call.1} parent=1 // pred_region
      %s522 = ssub.s32 32, 32
      %523 = vsyncadd [#allocation4], %s522
      %s525 = sshll.u32 [#allocation3], 4
      %s526 = int_to_ptr.vmem [resolvable:$true] %s525
      %528 = dma.vmem_to_hbm [thread:$0]  %s526, 32, %s7, [#allocation4]
    $region33: #{tpu_custom_call.1} parent=1 // pred_fallthru
      _
    // Predicated region
    $region34: #{tpu_custom_call.1} parent=1 // pred_check
      _
    $region35: #{tpu_custom_call.1} parent=1 // pred_check_branch
      %530 = sbr.rel (0) target = $region37
    $region36: #{tpu_custom_call.1} parent=1 // pred_region
      %531 = dma.done [#allocation4], 32
    $region37: #{tpu_custom_call.1} parent=1 // pred_fallthru
      _
    %532 = vsyncpa [#allocation4], 1

</llo_original>
